<compile_context>
chip_gen: v6e
topology: v6e:2x2x1
jax: 0.10.0
libtpu: 0.0.40
codegen_flags: <defaults>
</compile_context>

<pallas_src>
import functools
import math

import jax
import jax.numpy as jnp
from jax.experimental import pallas as pl
from jax.experimental.pallas import tpu as pltpu


def _pick_tile(b, d, *, budget_bytes, cap=1024, itemsize=2):
    """Largest T (multiple of 8, divides b, <= cap) whose pass-2 VMEM footprint fits."""
    best = None
    t = 8
    limit = min(b, cap)
    while t <= limit:
        if b % t == 0:
            # 2 input streams x 2 pipeline buffers x (T, D)  +  ~6 (T, T) f32 temporaries
            need = 2 * 2 * t * d * itemsize + 6 * t * t * 4
            if need <= budget_bytes:
                best = t
        t += 8
    return best


def _normalize_kernel(zi_ref, zj_ref, zn_ref, *, scale):
    """Row-normalize one tile of z_i and z_j, fold sqrt(1/temp), write zn[2, T, D]."""
    for h, ref in enumerate((zi_ref, zj_ref)):
        x = ref[...].astype(jnp.float32)
        sq = jnp.sum(x * x, axis=-1, keepdims=True)
        inv = jax.lax.rsqrt(jnp.maximum(sq, jnp.float32(1e-16)))   # EUP rsqrt
        inv = inv * jnp.float32(scale)                             # sqrt(1/temperature)
        zn_ref[h, :, :] = (x * inv).astype(zn_ref.dtype)


def _ntxent_tile_kernel(q_ref, k_ref, out_ref, m_ref, l_ref, pos_ref, *, qpb):
    qi = pl.program_id(0)
    ki = pl.program_id(1)

    @pl.when(ki == 0)
    def _init():
        m_ref[...] = jnp.full_like(m_ref, -1e30)
        l_ref[...] = jnp.zeros_like(l_ref)

    # MXU matmul, contracting last dims of both operands; f32 accumulation.
    # Both operands already carry sqrt(1/temperature) -> s = cos / temperature.
    s = jax.lax.dot_general(
        q_ref[...], k_ref[...],
        dimension_numbers=(((1,), (1,)), ((), ())),
        preferred_element_type=jnp.float32)                        # (T, T) f32

    def online_update(s_eff):
        m_prev = m_ref[...]
        m_new = jnp.maximum(m_prev, jnp.max(s_eff, axis=-1, keepdims=True))
        l_ref[...] = l_ref[...] * jnp.exp(m_prev - m_new) + jnp.sum(
            jnp.exp(s_eff - m_new), axis=-1, keepdims=True)
        m_ref[...] = m_new

    # Self-similarity only lives on the diagonal tile: gate the iota/compare/select
    # there so all other grid steps take the mask-free path (runtime skips cold branch).
    @pl.when(qi == ki)
    def _diag_tile():
        r = jax.lax.broadcasted_iota(jnp.int32, s.shape, 0)
        c = jax.lax.broadcasted_iota(jnp.int32, s.shape, 1)
        online_update(jnp.where(r == c, jnp.float32(-1e30), s))

    @pl.when(qi != ki)
    def _off_diag_tile():
        online_update(s)

    # Positive logit: diagonal of the key tile belonging to the *other* half, same
    # within-half block index. No third input stream, no finalize row-dot.
    ki_pair = (1 - qi // qpb) * qpb + qi % qpb

    @pl.when(ki == ki_pair)
    def _positive():
        r = jax.lax.broadcasted_iota(jnp.int32, s.shape, 0)
        c = jax.lax.broadcasted_iota(jnp.int32, s.shape, 1)
        pos_ref[...] = jnp.sum(jnp.where(r == c, s, jnp.float32(0.0)),
                               axis=-1, keepdims=True)

    @pl.when(ki == pl.num_programs(1) - 1)
    def _finalize():
        lse = m_ref[...] + jnp.log(l_ref[...])                     # (T, 1)
        out_ref[0, 0, 0] = jnp.sum(lse - pos_ref[...])


def ntxent_loss(z_i, z_j, temperature, *, compute_dtype=jnp.bfloat16, tile_cap=1024):
    """Pallas implementation of NtXentLoss.forward(z_i, z_j)."""
    assert z_i.shape == z_j.shape and z_i.ndim == 2
    b, d = z_i.shape
    n = 2 * b
    if b % 8 != 0:
        # TODO(synk): pad B to a multiple of 8 (masking padded rows/keys) instead of erroring.
        raise ValueError(f"batch size must be a multiple of 8, got {b}")

    itemsize = jnp.dtype(compute_dtype).itemsize

    # D-aware tile budget against the *physical* VMEM of this generation
    # (v7x: 64 MiB/TC, v5e/v6e: 128 MiB); scoped defaults are raised explicitly below.
    try:
        phys_vmem = int(pltpu.get_tpu_info().vmem_capacity_bytes)
    except Exception:
        phys_vmem = 64 << 20  # conservative (v7x per-core)
    tile_budget = min(2 * phys_vmem // 5, 40 << 20)

    t = _pick_tile(b, d, budget_bytes=tile_budget, cap=tile_cap, itemsize=itemsize)
    if t is None:
        raise ValueError(f"no VMEM-feasible tile for batch={b}, dim={d}")
    qpb = b // t                        # row blocks per half
    g = n // t                          # total row/key blocks (= 2*qpb, always even)

    # ---- Pass 1: normalize rows once (+ sqrt(1/temp) fold); layout (2, B, D). ----
    norm_kernel = functools.partial(
        _normalize_kernel, scale=math.sqrt(1.0 / float(temperature)))
    zn = pl.pallas_call(
        norm_kernel,
        out_shape=jax.ShapeDtypeStruct((2, b, d), compute_dtype),
        grid=(qpb,),
        in_specs=[pl.BlockSpec((t, d), lambda i: (i, 0)),
                  pl.BlockSpec((t, d), lambda i: (i, 0))],
        out_specs=pl.BlockSpec((2, t, d), lambda i: (0, i, 0)),
        compiler_params=pltpu.CompilerParams(dimension_semantics=("parallel",)),
    )(z_i, z_j)

    # ---- Pass 2: streaming-LSE NT-Xent. Row axis parallel, key (reduction) axis last. ----
    vmem_est = 2 * 2 * t * d * itemsize + 8 * t * t * 4
    vmem_limit = int(min(phys_vmem * 3 // 4, max(32 << 20, 2 * vmem_est)))
    kernel = functools.partial(_ntxent_tile_kernel, qpb=qpb)
    partials = pl.pallas_call(
        kernel,
        out_shape=jax.ShapeDtypeStruct((g, 1, 1), jnp.float32),
        grid_spec=pltpu.PrefetchScalarGridSpec(
            num_scalar_prefetch=0,
            grid=(g, g),
            in_specs=[
                # query tile: current row block
                pl.BlockSpec((None, t, d), lambda qi, ki: (qi // qpb, qi % qpb, 0)),
                # key tile: current key block (double-buffered along ki)
                pl.BlockSpec((None, t, d), lambda qi, ki: (ki // qpb, ki % qpb, 0)),
            ],
            out_specs=pl.BlockSpec((1, 1, 1), lambda qi, ki: (qi, 0, 0)),
            scratch_shapes=[pltpu.VMEM((t, 1), jnp.float32),   # running max  m
                            pltpu.VMEM((t, 1), jnp.float32),   # running sum  l
                            pltpu.VMEM((t, 1), jnp.float32)],  # positive logit
        ),
        compiler_params=pltpu.CompilerParams(
            dimension_semantics=("parallel", "arbitrary"),
            vmem_limit_bytes=vmem_limit),
        cost_estimate=pl.CostEstimate(
            flops=2 * n * n * d + 4 * n * n,
            transcendentals=n * n,
            bytes_accessed=n * d * itemsize * (g + 1) + g * 4),
    )(zn, zn)

    return jnp.sum(partials) / jnp.float32(n)


def _reference_loss(z_i, z_j, temperature):
    """Pure-JAX f32 reference mirroring the PyTorch module."""
    b = z_i.shape[0]
    n = 2 * b
    z = jnp.concatenate([z_i, z_j], axis=0).astype(jnp.float32)
    norm = jnp.maximum(jnp.linalg.norm(z, axis=-1, keepdims=True), 1e-8)
    zn = z / norm
    sim = (zn @ zn.T) / temperature
    idx = jnp.arange(n)
    pos = sim[idx, (idx + b) % n]
    sim_nodiag = jnp.where(jnp.eye(n, dtype=bool), -1e30, sim)
    lse = jax.scipy.special.logsumexp(sim_nodiag, axis=-1)
    return jnp.sum(lse - pos) / n


if __name__ == "__main__":
    key = jax.random.PRNGKey(0)
    k1, k2 = jax.random.split(key)
    batch, hidden = 8, 32
    temperature = 0.5

    z_i = jax.random.normal(k1, (batch, hidden), dtype=jnp.float32)
    z_j = jax.random.normal(k2, (batch, hidden), dtype=jnp.float32)

    loss = ntxent_loss(z_i, z_j, temperature)
    jax.block_until_ready(loss)

    ref = _reference_loss(z_i, z_j, temperature)
    # bf16 MXU operands with f32 accumulation -> few-percent tolerance vs f32 ref.
    assert jnp.allclose(loss, ref, rtol=5e-2, atol=5e-2), (loss, ref)

    print("KERNEL_OK")
</pallas_src>

<mosaic_0001>
module attributes {stable_mosaic.version = 11 : i64} {
  func.func @_normalize_kernel(%arg0: i32, %arg1: memref<8x32xf32, #tpu.memory_space<vmem>>, %arg2: memref<8x32xf32, #tpu.memory_space<vmem>>, %arg3: memref<2x8x32xbf16, #tpu.memory_space<vmem>>) attributes {dimension_semantics = [#tpu.dimension_semantics<parallel>], iteration_bounds = array<i64: 1>, scalar_prefetch = 0 : i64, scratch_operands = 0 : i64, tpu.core_type = #tpu.core_type<tc>, window_params = [{transform_indices = @transform_0, window_bounds = array<i64: 8, 32>}, {transform_indices = @transform_1, window_bounds = array<i64: 8, 32>}, {transform_indices = @transform_2, window_bounds = array<i64: 2, 8, 32>}]} {
    %c0 = arith.constant 0 : index
    %c0_0 = arith.constant 0 : index
    %0 = vector.load %arg1[%c0, %c0_0] : memref<8x32xf32, #tpu.memory_space<vmem>>, vector<8x32xf32>
    %1 = arith.mulf %0, %0 : vector<8x32xf32>
    %cst = arith.constant dense<0.000000e+00> : vector<8xf32>
    %2 = vector.multi_reduction <add>, %1, %cst [1] : vector<8x32xf32> to vector<8xf32>
    %3 = vector.shape_cast %2 : vector<8xf32> to vector<8x1xf32>
    %cst_1 = arith.constant 1.000000e-16 : f32
    %4 = vector.broadcast %cst_1 : f32 to vector<8x1xf32>
    %5 = arith.maximumf %3, %4 : vector<8x1xf32>
    %6 = math.rsqrt %5 : vector<8x1xf32>
    %cst_2 = arith.constant 1.41421354 : f32
    %7 = vector.broadcast %cst_2 : f32 to vector<8x1xf32>
    %8 = arith.mulf %6, %7 : vector<8x1xf32>
    %9 = vector.broadcast %8 : vector<8x1xf32> to vector<8x32xf32>
    %10 = arith.mulf %0, %9 : vector<8x32xf32>
    %11 = arith.truncf %10 : vector<8x32xf32> to vector<8x32xbf16>
    %c0_3 = arith.constant 0 : index
    %c0_4 = arith.constant 0 : index
    %c0_5 = arith.constant 0 : index
    %12 = vector.load %arg3[%c0_3, %c0_4, %c0_5] : memref<2x8x32xbf16, #tpu.memory_space<vmem>>, vector<1x8x32xbf16>
    %13 = vector.shape_cast %12 : vector<1x8x32xbf16> to vector<8x32xbf16>
    %14 = vector.shape_cast %11 : vector<8x32xbf16> to vector<1x8x32xbf16>
    tpu.vector_store %arg3[%c0_3, %c0_4, %c0_5], %14 {strides = array<i32>} : memref<2x8x32xbf16, #tpu.memory_space<vmem>>, vector<1x8x32xbf16>,
    %c0_6 = arith.constant 0 : index
    %c0_7 = arith.constant 0 : index
    %15 = vector.load %arg2[%c0_6, %c0_7] : memref<8x32xf32, #tpu.memory_space<vmem>>, vector<8x32xf32>
    %16 = arith.mulf %15, %15 : vector<8x32xf32>
    %cst_8 = arith.constant dense<0.000000e+00> : vector<8xf32>
    %17 = vector.multi_reduction <add>, %16, %cst_8 [1] : vector<8x32xf32> to vector<8xf32>
    %18 = vector.shape_cast %17 : vector<8xf32> to vector<8x1xf32>
    %cst_9 = arith.constant 1.000000e-16 : f32
    %19 = vector.broadcast %cst_9 : f32 to vector<8x1xf32>
    %20 = arith.maximumf %18, %19 : vector<8x1xf32>
    %21 = math.rsqrt %20 : vector<8x1xf32>
    %cst_10 = arith.constant 1.41421354 : f32
    %22 = vector.broadcast %cst_10 : f32 to vector<8x1xf32>
    %23 = arith.mulf %21, %22 : vector<8x1xf32>
    %24 = vector.broadcast %23 : vector<8x1xf32> to vector<8x32xf32>
    %25 = arith.mulf %15, %24 : vector<8x32xf32>
    %26 = arith.truncf %25 : vector<8x32xf32> to vector<8x32xbf16>
    %c1 = arith.constant 1 : index
    %c0_11 = arith.constant 0 : index
    %c0_12 = arith.constant 0 : index
    %27 = vector.load %arg3[%c1, %c0_11, %c0_12] : memref<2x8x32xbf16, #tpu.memory_space<vmem>>, vector<1x8x32xbf16>
    %28 = vector.shape_cast %27 : vector<1x8x32xbf16> to vector<8x32xbf16>
    %29 = vector.shape_cast %26 : vector<8x32xbf16> to vector<1x8x32xbf16>
    tpu.vector_store %arg3[%c1, %c0_11, %c0_12], %29 {strides = array<i32>} : memref<2x8x32xbf16, #tpu.memory_space<vmem>>, vector<1x8x32xbf16>,
    return
  }
  func.func @transform_0(%arg0: i32) -> (i32, i32) {
    %c0_i32 = arith.constant 0 : i32
    %c0_i32_0 = arith.constant 0 : i32
    return %arg0, %c0_i32 : i32, i32
  }
  func.func @transform_1(%arg0: i32) -> (i32, i32) {
    %c0_i32 = arith.constant 0 : i32
    %c0_i32_0 = arith.constant 0 : i32
    return %arg0, %c0_i32 : i32, i32
  }
  func.func @transform_2(%arg0: i32) -> (i32, i32, i32) {
    %c0_i32 = arith.constant 0 : i32
    %c0_i32_0 = arith.constant 0 : i32
    %c0_i32_1 = arith.constant 0 : i32
    return %c0_i32, %arg0, %c0_i32_0 : i32, i32, i32
  }
}

</mosaic_0001>

<llo_original>
// kernel: tpu_custom_call.1
$region0: #{tpu_custom_call.1}
  #allocation0 [shape = 'u32[]', space=smem, size = 0x4, offset = 0x4, fixed_abs, tag = 'smem constant byte address 0x4 - core index']
  #allocation1 [shape = 'u32[144,128]{1,0:T(1,128)}', space=vmem, size = 0x12000, scoped, tag = 'internal scratch']
  %s0 = inlined_call_operand.hbm [shape: f32[8,32], index: 0, kind: input, shape index: {}]
  %s1 = inlined_call_operand.hbm [shape: f32[8,32], index: 1, kind: input, shape index: {}]
  %s2 = inlined_call_operand.hbm [shape: bf16[2,8,32], index: 2, kind: output, shape index: {}]
  %s3 = sld [smem:[#allocation0]]
  $region26: #{tpu_custom_call.1} parent=0
    _
  %s5 = ssub.s32 1, %s3
  %s6 = scalar_select 0, %s5, %s3
  $region1: #{tpu_custom_call.1} parent=0
    #allocation2 [shape = 'u8[4096]{0}', space=vmem, size = 0x1000, scoped, tag = 'input window, operand 0, single buffered']
    #allocation3 [shape = 's32[1]{0}', space=sflag, size = 0x4, scoped, tag = 'scoped memory for tpu_custom_call.1']
    #allocation4 [shape = 's32[1]{0}', space=sflag, size = 0x4, scoped, tag = 'scoped memory for tpu_custom_call.1']
    #allocation5 [shape = 'u8[4096]{0}', space=vmem, size = 0x1000, scoped, tag = 'input window, operand 1, single buffered']
    #allocation6 [shape = 's32[1]{0}', space=sflag, size = 0x4, scoped, tag = 'scoped memory for tpu_custom_call.1']
    #allocation7 [shape = 'u8[4096]{0}', space=vmem, size = 0x1000, scoped, tag = 'output window, operand 0, single buffered']
    %7 = vsyncpa [#allocation3], 0
    %8 = vsyncpa [#allocation6], 0
    %9 = vsyncpa [#allocation4], 0
    // Predicated region
    $region2: #{tpu_custom_call.1} parent=1 // pred_check
      _
    $region3: #{tpu_custom_call.1} parent=1 // pred_check_branch
      %11 = sbr.rel (0) target = $region5
    $region4: #{tpu_custom_call.1} parent=1 // pred_region
      %s13 = ssub.s32 128, 128
      %14 = vsyncadd [#allocation3], %s13
      %s16 = sshll.u32 [#allocation2], 4
      %s17 = int_to_ptr.vmem [resolvable:$true] %s16
      %19 = dma.hbm_to_vmem [thread:$0]  %s0, 128, %s17, [#allocation3]
    $region5: #{tpu_custom_call.1} parent=1 // pred_fallthru
      _
    // Predicated region
    $region6: #{tpu_custom_call.1} parent=1 // pred_check
      _
    $region7: #{tpu_custom_call.1} parent=1 // pred_check_branch
      %21 = sbr.rel (0) target = $region9
    $region8: #{tpu_custom_call.1} parent=1 // pred_region
      %s23 = ssub.s32 128, 128
      %24 = vsyncadd [#allocation6], %s23
      %s26 = sshll.u32 [#allocation5], 4
      %s27 = int_to_ptr.vmem [resolvable:$true] %s26
      %29 = dma.hbm_to_vmem [thread:$0]  %s1, 128, %s27, [#allocation6]
    $region9: #{tpu_custom_call.1} parent=1 // pred_fallthru
      _
    // Predicated region
    $region10: #{tpu_custom_call.1} parent=1 // pred_check
      _
    $region11: #{tpu_custom_call.1} parent=1 // pred_check_branch
      %31 = sbr.rel (0) target = $region13
    $region12: #{tpu_custom_call.1} parent=1 // pred_region
      %32 = dma.done [#allocation3], 128
    $region13: #{tpu_custom_call.1} parent=1 // pred_fallthru
      _
    // Predicated region
    $region14: #{tpu_custom_call.1} parent=1 // pred_check
      _
    $region15: #{tpu_custom_call.1} parent=1 // pred_check_branch
      %34 = sbr.rel (0) target = $region17
    $region16: #{tpu_custom_call.1} parent=1 // pred_region
      %35 = dma.done [#allocation6], 128
    $region17: #{tpu_custom_call.1} parent=1 // pred_fallthru
      _
    %v36 = vld [vmem:[#allocation2] sm:$0xff]
    %v37 = vmul.f32 %v36, %v36
    %vm38 = vcmask 261120
    %v39 = vsel %vm38, %v37, 0.0
    %40 = vadd.xlane.f32.xlu0 %v39
    %v41 = vpop.xlane.xlu0 %40
    %v42 = vmax.f32 %v41, 1e-16
    %v43 = vrsqrt.pop %v42
    %v44 = vmul.f32 %v43, 1.4142135
    %v45 = vmul.f32 %v36, %v44
    %v46 = vpack.c.bf16 %v45, %v45
    %vm47 = vcmask 257024
    %48 = vst.msk [vmem:[#allocation7] sm:$0xf] %vm47, %v46
    %v49 = vld [vmem:[#allocation5] sm:$0xff]
    %v50 = vmul.f32 %v49, %v49
    %v51 = vsel %vm38, %v50, 0.0
    %52 = vadd.xlane.f32.xlu0 %v51
    %v53 = vpop.xlane.xlu0 %52
    %v54 = vmax.f32 %v53, 1e-16
    %v55 = vrsqrt.pop %v54
    %v56 = vmul.f32 %v55, 1.4142135
    %v57 = vmul.f32 %v49, %v56
    %v58 = vpack.c.bf16 %v57, %v57
    %s59 = scalar_lea.vmem [#allocation7], 4
    %60 = vst.msk [vmem:[%s59] sm:$0xf] %vm47, %v58
    // Predicated region
    $region18: #{tpu_custom_call.1} parent=1 // pred_check
      _
    $region19: #{tpu_custom_call.1} parent=1 // pred_check_branch
      %62 = sbr.rel (0) target = $region21
    $region20: #{tpu_custom_call.1} parent=1 // pred_region
      %s64 = ssub.s32 128, 128
      %65 = vsyncadd [#allocation4], %s64
      %s66 = sshll.u32 [#allocation7], 4
      %s67 = int_to_ptr.vmem [resolvable:$true] %s66
      %72 = dma.vmem_to_hbm [thread:$0]  %s67, 128, %s2, [#allocation4], 64, 64, 4
    $region21: #{tpu_custom_call.1} parent=1 // pred_fallthru
      _
    // Predicated region
    $region22: #{tpu_custom_call.1} parent=1 // pred_check
      _
    $region23: #{tpu_custom_call.1} parent=1 // pred_check_branch
      %74 = sbr.rel (0) target = $region25
    $region24: #{tpu_custom_call.1} parent=1 // pred_region
      %75 = dma.done [#allocation4], 128
    $region25: #{tpu_custom_call.1} parent=1 // pred_fallthru
      _
    %76 = vsyncpa [#allocation3], 1
    %77 = vsyncpa [#allocation6], 1
    %78 = vsyncpa [#allocation4], 1

</llo_original>
